<compile_context>
chip_gen: v6e
topology: v6e:2x2x1
jax: 0.10.0
libtpu: 0.0.40
codegen_flags: <defaults>
</compile_context>

<pallas_src>
import functools

import jax
import jax.numpy as jnp
import numpy as np
from jax.experimental import pallas as pl
from jax.experimental.pallas import tpu as pltpu


def _round_up(x, m):
    return ((x + m - 1) // m) * m


def _vmem_limit_bytes():
    """Generation-aware VMEM budget (v5e/v6e: 128 MiB, v7x: 64 MiB physical)."""
    try:
        cap = pltpu.get_tpu_info().vmem_capacity_bytes
    except Exception:
        cap = 64 * 1024 * 1024  # conservative fallback (v7x-sized)
    # ~48 MiB on v7x, ~96 MiB on v5e/v6e; always leaves >= 25% headroom.
    return min((cap * 3) // 4, 100 * 1024 * 1024)


# ---------------------------------------------------------------------------
# Training path:  loss = -sum_b logsigmoid( u_b . i_b  -  u_b . j_b )
# ---------------------------------------------------------------------------
def _bpr_train_kernel(u_ref, i_ref, j_ref, out_ref, *, total_b, tile_b):
    t = pl.program_id(0)

    u = u_ref[...].astype(jnp.float32)       # (TB, D)
    vi = i_ref[...].astype(jnp.float32)      # (TB, D)
    vj = j_ref[...].astype(jnp.float32)      # (TB, D)

    # prediction_i - prediction_j == u . (i - j): one lane reduce per row.
    x = jnp.sum(u * (vi - vj), axis=-1, keepdims=True)              # (TB, 1)
    # numerically stable logsigmoid(x) = min(x, 0) - log1p(exp(-|x|))
    ls = jnp.minimum(x, 0.0) - jnp.log1p(jnp.exp(-jnp.abs(x)))      # (TB, 1)

    # zero the rows that only exist because of batch padding
    row = t * tile_b + jax.lax.broadcasted_iota(jnp.int32, (tile_b, 1), 0)
    ls = jnp.where(row < total_b, ls, 0.0)

    partial = -jnp.sum(ls)                                           # scalar
    # Each grid step owns a private, fully dense (8, 128) output block (one
    # vreg): no serial accumulator, no sub-(8,128) masked stores, and the
    # batch axis stays "parallel" so both v7x TensorCores get work.
    out_ref[...] = jnp.broadcast_to(partial, (1, 8, 128))


def _choose_train_tile(B, D, itemsize, budget_bytes):
    # 3 inputs x double-buffered tiles + their f32 upcast copies
    per_row = 3 * 2 * D * itemsize + 3 * D * 4
    tb = budget_bytes // max(per_row, 1)
    tb = max(8, min(tb, 2048))                       # ~63% -> ~86% of roofline
    # keep >= 2 grid steps so the parallel axis can shard across v7x cores
    tb = min(tb, max(8, _round_up((B + 1) // 2, 8)))
    return (tb // 8) * 8


def bpr_train_loss(user_table, item_table, u_idx, i_idx, j_idx):
    """Equivalent of BPR_model.forward(u, i, j, test=False) -> scalar loss."""
    B = u_idx.shape[0]
    D = user_table.shape[1]
    itemsize = jnp.dtype(user_table.dtype).itemsize
    limit = _vmem_limit_bytes()

    # Dense pre-gather (XLA gather).  allow_input_fusion below lets XLA fuse
    # these producers into the pallas_call inputs so the (B, D) gathers are
    # not written to HBM and read back.  bf16 tables work unchanged (kernel
    # upcasts to f32), halving streamed bytes where desired.
    u_e = jnp.take(user_table, u_idx, axis=0)    # (B, D)
    i_e = jnp.take(item_table, i_idx, axis=0)    # (B, D)
    j_e = jnp.take(item_table, j_idx, axis=0)    # (B, D)

    tb = _choose_train_tile(B, D, itemsize, limit - (4 << 20))
    num_tiles = max(2, -(-B // tb))              # >= 2 grid steps, always
    Bp = num_tiles * tb
    if Bp != B:
        pad = Bp - B
        u_e = jnp.pad(u_e, ((0, pad), (0, 0)))
        i_e = jnp.pad(i_e, ((0, pad), (0, 0)))
        j_e = jnp.pad(j_e, ((0, pad), (0, 0)))

    # TODO(synk): if an xprof/bundle check shows exposed input DMA, add
    # pipeline_mode=pl.Buffered(3) on the three in_specs and sweep.
    partials = pl.pallas_call(
        functools.partial(_bpr_train_kernel, total_b=B, tile_b=tb),
        out_shape=jax.ShapeDtypeStruct((num_tiles, 8, 128), jnp.float32),
        grid=(num_tiles,),
        in_specs=[
            pl.BlockSpec((tb, D), lambda t: (t, 0)),   # user rows
            pl.BlockSpec((tb, D), lambda t: (t, 0)),   # pos item rows
            pl.BlockSpec((tb, D), lambda t: (t, 0)),   # neg item rows
        ],
        out_specs=pl.BlockSpec((1, 8, 128), lambda t: (t, 0, 0)),
        compiler_params=pltpu.CompilerParams(
            dimension_semantics=("parallel",),          # independent tiles
            vmem_limit_bytes=limit,
            allow_input_fusion=[True, True, True],
        ),
    )(u_e, i_e, j_e)

    return jnp.sum(partials[:, 0, 0])


# ---------------------------------------------------------------------------
# Test path:  sigmoid( bmm(u[:, None, :], item_embed(i).transpose(1, 2)) )
# ---------------------------------------------------------------------------
def _bpr_test_kernel(u_ref, i_ref, o_ref):
    u = u_ref[...].astype(jnp.float32)                  # (TB, D)
    it = i_ref[...].astype(jnp.float32)                 # (TB, Kp, D)
    # Batched GEMV as VPU mult + lane reduce (avoids degenerate MXU matmuls).
    scores = jnp.sum(u[:, None, :] * it, axis=-1)       # (TB, Kp)
    o_ref[...] = jax.nn.sigmoid(scores)


def _choose_test_tile(B, Kp, D, itemsize, budget_bytes):
    per_row = (
        2 * (Kp * D + D) * itemsize     # double-buffered input tiles
        + 2 * Kp * 4                    # double-buffered f32 output tile
        + (Kp * D + D) * 4              # f32 upcast copies
        + Kp * D * 4                    # (tb, Kp, D) broadcast intermediate
    )
    tb = budget_bytes // max(per_row, 1)
    tb = max(8, min(tb, 1024))
    tb = min(tb, max(8, _round_up((B + 1) // 2, 8)))   # >= 2 grid steps
    return (tb // 8) * 8


def bpr_test_scores(user_table, item_table, u_idx, i_idx):
    """Equivalent of BPR_model.forward(u, i, test=True) -> (B, 1, K) sigmoid."""
    B, K = i_idx.shape
    D = user_table.shape[1]
    itemsize = jnp.dtype(user_table.dtype).itemsize
    limit = _vmem_limit_bytes()

    u_e = jnp.take(user_table, u_idx, axis=0)    # (B, D)
    i_e = jnp.take(item_table, i_idx, axis=0)    # (B, K, D)

    # For non-trivial candidate sets, pad K to a lane-dense multiple of 128 so
    # every output store is an unmasked vst (biggest single measured lever).
    Kp = _round_up(K, 128) if K >= 64 else K
    if Kp != K:
        i_e = jnp.pad(i_e, ((0, 0), (0, Kp - K), (0, 0)))

    tb = _choose_test_tile(B, Kp, D, itemsize, limit - (4 << 20))
    num_tiles = max(2, -(-B // tb))
    Bp = num_tiles * tb
    if Bp != B:
        pad = Bp - B
        u_e = jnp.pad(u_e, ((0, pad), (0, 0)))
        i_e = jnp.pad(i_e, ((0, pad), (0, 0), (0, 0)))

    out = pl.pallas_call(
        _bpr_test_kernel,
        out_shape=jax.ShapeDtypeStruct((Bp, Kp), jnp.float32),
        grid=(num_tiles,),
        in_specs=[
            pl.BlockSpec((tb, D), lambda b: (b, 0)),
            pl.BlockSpec((tb, Kp, D), lambda b: (b, 0, 0)),
        ],
        out_specs=pl.BlockSpec((tb, Kp), lambda b: (b, 0)),
        compiler_params=pltpu.CompilerParams(
            dimension_semantics=("parallel",),
            vmem_limit_bytes=limit,
            allow_input_fusion=[True, True],
        ),
    )(u_e, i_e)

    return out[:B, None, :K]                     # match torch bmm output (B, 1, K)


# ---------------------------------------------------------------------------
if __name__ == "__main__":
    num_user, num_item, embed_dim = 64, 128, 128
    B, K = 8, 8

    key = jax.random.PRNGKey(0)
    k_u, k_i, k_ids = jax.random.split(key, 3)

    # deterministic orthogonal init, mirroring nn.init.orthogonal_
    ortho = jax.nn.initializers.orthogonal()
    user_table = ortho(k_u, (num_user, embed_dim), jnp.float32)
    item_table = ortho(k_i, (num_item, embed_dim), jnp.float32)

    k1, k2, k3, k4, k5 = jax.random.split(k_ids, 5)
    u_idx = jax.random.randint(k1, (B,), 0, num_user, dtype=jnp.int32)
    i_idx = jax.random.randint(k2, (B,), 0, num_item, dtype=jnp.int32)
    j_idx = jax.random.randint(k3, (B,), 0, num_item, dtype=jnp.int32)
    i_test_idx = jax.random.randint(k4, (B, K), 0, num_item, dtype=jnp.int32)

    # ---- training path (test=False): scalar BPR loss --------------------
    loss = bpr_train_loss(user_table, item_table, u_idx, i_idx, j_idx)
    loss = jax.block_until_ready(loss)

    u_e = user_table[u_idx]
    i_e = item_table[i_idx]
    j_e = item_table[j_idx]
    pred_i = jnp.sum(u_e * i_e, axis=-1)
    pred_j = jnp.sum(u_e * j_e, axis=-1)
    loss_ref = -jnp.sum(jax.nn.log_sigmoid(pred_i - pred_j))
    np.testing.assert_allclose(np.asarray(loss), np.asarray(loss_ref),
                               rtol=1e-5, atol=1e-5)

    # ---- test path (test=True), small K: sigmoid scores (B, 1, K) -------
    scores = bpr_test_scores(user_table, item_table, u_idx, i_test_idx)
    scores = jax.block_until_ready(scores)

    i_te = item_table[i_test_idx]                               # (B, K, D)
    scores_ref = jax.nn.sigmoid(
        jnp.einsum("bd,bkd->bk", u_e, i_te))[:, None, :]
    np.testing.assert_allclose(np.asarray(scores), np.asarray(scores_ref),
                               rtol=1e-5, atol=1e-5)

    # ---- test path, larger K: exercises the lane-dense K-padding path ---
    K2 = 200
    i_test2_idx = jax.random.randint(k5, (B, K2), 0, num_item, dtype=jnp.int32)
    scores2 = bpr_test_scores(user_table, item_table, u_idx, i_test2_idx)
    scores2 = jax.block_until_ready(scores2)

    scores2_ref = jax.nn.sigmoid(
        jnp.einsum("bd,bkd->bk", u_e, item_table[i_test2_idx]))[:, None, :]
    np.testing.assert_allclose(np.asarray(scores2), np.asarray(scores2_ref),
                               rtol=1e-5, atol=1e-5)

    print("KERNEL_OK")
</pallas_src>

<mosaic_0001>
module attributes {stable_mosaic.version = 11 : i64} {
  func.func @_bpr_train_kernel(%arg0: i32, %arg1: memref<8x128xf32, #tpu.memory_space<vmem>>, %arg2: memref<8x128xf32, #tpu.memory_space<vmem>>, %arg3: memref<8x128xf32, #tpu.memory_space<vmem>>, %arg4: memref<1x8x128xf32, #tpu.memory_space<vmem>>) attributes {dimension_semantics = [#tpu.dimension_semantics<parallel>], iteration_bounds = array<i64: 2>, scalar_prefetch = 0 : i64, scratch_operands = 0 : i64, tpu.core_type = #tpu.core_type<tc>, window_params = [{transform_indices = @transform_0, window_bounds = array<i64: 8, 128>}, {transform_indices = @transform_1, window_bounds = array<i64: 8, 128>}, {transform_indices = @transform_2, window_bounds = array<i64: 8, 128>}, {transform_indices = @transform_3, window_bounds = array<i64: 1, 8, 128>}]} {
    %c0 = arith.constant 0 : index
    %c0_0 = arith.constant 0 : index
    %0 = vector.load %arg1[%c0, %c0_0] : memref<8x128xf32, #tpu.memory_space<vmem>>, vector<8x128xf32>
    %c0_1 = arith.constant 0 : index
    %c0_2 = arith.constant 0 : index
    %1 = vector.load %arg2[%c0_1, %c0_2] : memref<8x128xf32, #tpu.memory_space<vmem>>, vector<8x128xf32>
    %c0_3 = arith.constant 0 : index
    %c0_4 = arith.constant 0 : index
    %2 = vector.load %arg3[%c0_3, %c0_4] : memref<8x128xf32, #tpu.memory_space<vmem>>, vector<8x128xf32>
    %3 = arith.subf %1, %2 : vector<8x128xf32>
    %4 = arith.mulf %0, %3 : vector<8x128xf32>
    %cst = arith.constant dense<0.000000e+00> : vector<8xf32>
    %5 = vector.multi_reduction <add>, %4, %cst [1] : vector<8x128xf32> to vector<8xf32>
    %6 = vector.shape_cast %5 : vector<8xf32> to vector<8x1xf32>
    %cst_5 = arith.constant 0.000000e+00 : f32
    %7 = vector.broadcast %cst_5 : f32 to vector<8x1xf32>
    %8 = arith.minimumf %6, %7 : vector<8x1xf32>
    %9 = math.absf %6 : vector<8x1xf32>
    %cst_6 = arith.constant 0.000000e+00 : f32
    %10 = vector.broadcast %cst_6 : f32 to vector<8x1xf32>
    %11 = arith.subf %10, %9 : vector<8x1xf32>
    %12 = math.exp %11 : vector<8x1xf32>
    %13 = math.log1p %12 : vector<8x1xf32>
    %14 = arith.subf %8, %13 : vector<8x1xf32>
    %c8_i32 = arith.constant 8 : i32
    %15 = arith.muli %arg0, %c8_i32 : i32
    %16 = tpu.iota {dimensions = array<i32: 0>} : vector<8x1xi32>
    %17 = vector.broadcast %15 : i32 to vector<8x1xi32>
    %18 = arith.addi %17, %16 : vector<8x1xi32>
    %c8_i32_7 = arith.constant 8 : i32
    %19 = vector.broadcast %c8_i32_7 : i32 to vector<8x1xi32>
    %20 = arith.cmpi slt, %18, %19 : vector<8x1xi32>
    %cst_8 = arith.constant 0.000000e+00 : f32
    %21 = vector.broadcast %cst_8 : f32 to vector<8x1xf32>
    %22 = arith.select %20, %14, %21 : vector<8x1xi1>, vector<8x1xf32>
    %23 = vector.shape_cast %22 : vector<8x1xf32> to vector<1x8x1xf32>
    %cst_9 = arith.constant dense<0.000000e+00> : vector<1xf32>
    %24 = vector.multi_reduction <add>, %23, %cst_9 [1, 2] : vector<1x8x1xf32> to vector<1xf32>
    %25 = vector.shape_cast %24 : vector<1xf32> to vector<1x1x1xf32>
    %26 = vector.extract %25[0, 0, 0] : f32 from vector<1x1x1xf32>
    %cst_10 = arith.constant 0.000000e+00 : f32
    %27 = arith.subf %cst_10, %26 : f32
    %28 = vector.broadcast %27 : f32 to vector<1x8x128xf32>
    %c0_11 = arith.constant 0 : index
    %c0_12 = arith.constant 0 : index
    %c0_13 = arith.constant 0 : index
    %29 = vector.load %arg4[%c0_11, %c0_12, %c0_13] : memref<1x8x128xf32, #tpu.memory_space<vmem>>, vector<1x8x128xf32>
    tpu.vector_store %arg4[%c0_11, %c0_12, %c0_13], %28 {strides = array<i32>} : memref<1x8x128xf32, #tpu.memory_space<vmem>>, vector<1x8x128xf32>,
    return
  }
  func.func @transform_0(%arg0: i32) -> (i32, i32) {
    %c0_i32 = arith.constant 0 : i32
    %c0_i32_0 = arith.constant 0 : i32
    return %arg0, %c0_i32 : i32, i32
  }
  func.func @transform_1(%arg0: i32) -> (i32, i32) {
    %c0_i32 = arith.constant 0 : i32
    %c0_i32_0 = arith.constant 0 : i32
    return %arg0, %c0_i32 : i32, i32
  }
  func.func @transform_2(%arg0: i32) -> (i32, i32) {
    %c0_i32 = arith.constant 0 : i32
    %c0_i32_0 = arith.constant 0 : i32
    return %arg0, %c0_i32 : i32, i32
  }
  func.func @transform_3(%arg0: i32) -> (i32, i32, i32) {
    %c0_i32 = arith.constant 0 : i32
    %c0_i32_0 = arith.constant 0 : i32
    %c0_i32_1 = arith.constant 0 : i32
    return %arg0, %c0_i32, %c0_i32_0 : i32, i32, i32
  }
}

</mosaic_0001>

<llo_original>
// kernel: tpu_custom_call.1
$region0: #{tpu_custom_call.1}
  #allocation0 [shape = 'u32[]', space=smem, size = 0x4, offset = 0x4, fixed_abs, tag = 'smem constant byte address 0x4 - core index']
  #allocation1 [shape = 'u32[144,128]{1,0:T(1,128)}', space=vmem, size = 0x12000, scoped, tag = 'internal scratch']
  %s0 = inlined_call_operand.hbm [shape: f32[16,128], index: 0, kind: input, shape index: {}]
  %s1 = inlined_call_operand.hbm [shape: f32[16,128], index: 1, kind: input, shape index: {}]
  %s2 = inlined_call_operand.hbm [shape: f32[16,128], index: 2, kind: input, shape index: {}]
  %s3 = inlined_call_operand.hbm [shape: f32[2,8,128], index: 3, kind: output, shape index: {}]
  %s4 = sld [smem:[#allocation0]]
  $region57: #{tpu_custom_call.1} parent=0
    _
  %s6 = ssub.s32 1, %s4
  %s7 = scalar_select 0, %s6, %s4
  $region1: #{tpu_custom_call.1} parent=0
    #allocation2 [shape = 'u8[8192]{0}', space=vmem, size = 0x2000, scoped, tag = 'input window, operand 0']
    #allocation3 [shape = 's32[2]{0}', space=sflag, size = 0x8, scoped, tag = 'scoped memory for tpu_custom_call.1']
    #allocation4 [shape = 's32[2]{0}', space=sflag, size = 0x8, scoped, tag = 'scoped memory for tpu_custom_call.1']
    #allocation5 [shape = 'u8[8192]{0}', space=vmem, size = 0x2000, scoped, tag = 'input window, operand 1']
    #allocation6 [shape = 's32[2]{0}', space=sflag, size = 0x8, scoped, tag = 'scoped memory for tpu_custom_call.1']
    #allocation7 [shape = 'u8[8192]{0}', space=vmem, size = 0x2000, scoped, tag = 'input window, operand 2']
    #allocation8 [shape = 'u8[8192]{0}', space=vmem, size = 0x2000, scoped, tag = 'output window, operand 0']
    %8 = vsyncpa [#allocation3], 0
    %s9 = scalar_lea.sflag [#allocation3], 1
    %10 = vsyncpa %s9, 0
    %11 = vsyncpa [#allocation6], 0
    %s12 = scalar_lea.sflag [#allocation6], 1
    %13 = vsyncpa %s12, 0
    %14 = vsyncpa [#allocation4], 0
    %s15 = scalar_lea.sflag [#allocation4], 1
    %16 = vsyncpa %s15, 0
    loop: start=0, step=1, limit=4
    $region2: #{tpu_custom_call.1} parent=1 // loop_pre_header
      _
    $region3: #{tpu_custom_call.1} parent=1 // loop_header
      %s18 = sphi 0, %s22
      %p19 = scmp.ge.s32.totalorder %s18, 4
      %s28 = sphi 0, %s30
      %s31 = sphi 0, %s28
      %s32 = sphi 0, %s31
      %s48 = sphi 0, %s32
      %s54 = sphi 0, %s56
      %s57 = sphi 0, %s54
      %s58 = sphi 0, %s57
      %s74 = sphi 0, %s58
      %s80 = sphi 0, %s82
      %s83 = sphi 0, %s80
      %s84 = sphi 0, %s83
      %s100 = sphi 0, %s84
      %s106 = sphi 0, %s108
      %s109 = sphi 0, %s106
      %s110 = sphi 0, %s109
      %s126 = sphi 0, %s110
    $region4: #{tpu_custom_call.1} parent=1 // loop_header_branch
      %21 = sbr.rel (%p19) target = $region8
    $region5: #{tpu_custom_call.1} parent=1 // loop_body
      %s23 = ssub.s32 %s18, 1
      %s24 = ssub.s32 %s18, 2
      %s25 = sadd.s32 %s18, 1
      %s26 = ssub.s32 %s18, %s25
      %p27 = scmp.eq.s32.totalorder %s26, 0
      %s29 = sadd.s32 %s28, 1
      %s30 = scalar_select %p27, %s28, %s29
      %p33 = pneg %p27
      %p34 = scmp.eq.s32.totalorder %s18, 1
      %p35 = por %p33, %p34
      %p36 = scmp.ne.s32.totalorder %s28, %s31
      %p37 = scmp.eq.s32.totalorder %s18, 0
      %p38 = por %p36, %p37
      %p39 = scmp.ne.s32.totalorder %s28, %s31
      %p40 = scmp.eq.s32.totalorder %s23, 1
      %p41 = por %p39, %p40
      %p42 = scmp.ne.s32.totalorder %s31, %s32
      %p43 = scmp.eq.s32.totalorder %s23, 0
      %p44 = por %p42, %p43
      %p45 = scmp.ne.s32.totalorder %s31, %s32
      %p46 = scmp.eq.s32.totalorder %s24, 1
      %p47 = por %p45, %p46
      %p49 = scmp.ne.s32.totalorder %s32, %s48
      %p50 = scmp.eq.s32.totalorder %s24, 0
      %p51 = por %p49, %p50
      %s52 = ssub.s32 %s18, %s25
      %p53 = scmp.eq.s32.totalorder %s52, 0
      %s55 = sadd.s32 %s54, 1
      %s56 = scalar_select %p53, %s54, %s55
      %p59 = pneg %p53
      %p60 = scmp.eq.s32.totalorder %s18, 1
      %p61 = por %p59, %p60
      %p62 = scmp.ne.s32.totalorder %s54, %s57
      %p63 = scmp.eq.s32.totalorder %s18, 0
      %p64 = por %p62, %p63
      %p65 = scmp.ne.s32.totalorder %s54, %s57
      %p66 = scmp.eq.s32.totalorder %s23, 1
      %p67 = por %p65, %p66
      %p68 = scmp.ne.s32.totalorder %s57, %s58
      %p69 = scmp.eq.s32.totalorder %s23, 0
      %p70 = por %p68, %p69
      %p71 = scmp.ne.s32.totalorder %s57, %s58
      %p72 = scmp.eq.s32.totalorder %s24, 1
      %p73 = por %p71, %p72
      %p75 = scmp.ne.s32.totalorder %s58, %s74
      %p76 = scmp.eq.s32.totalorder %s24, 0
      %p77 = por %p75, %p76
      %s78 = ssub.s32 %s18, %s25
      %p79 = scmp.eq.s32.totalorder %s78, 0
      %s81 = sadd.s32 %s80, 1
      %s82 = scalar_select %p79, %s80, %s81
      %p85 = pneg %p79
      %p86 = scmp.eq.s32.totalorder %s18, 1
      %p87 = por %p85, %p86
      %p88 = scmp.ne.s32.totalorder %s80, %s83
      %p89 = scmp.eq.s32.totalorder %s18, 0
      %p90 = por %p88, %p89
      %p91 = scmp.ne.s32.totalorder %s80, %s83
      %p92 = scmp.eq.s32.totalorder %s23, 1
      %p93 = por %p91, %p92
      %p94 = scmp.ne.s32.totalorder %s83, %s84
      %p95 = scmp.eq.s32.totalorder %s23, 0
      %p96 = por %p94, %p95
      %p97 = scmp.ne.s32.totalorder %s83, %s84
      %p98 = scmp.eq.s32.totalorder %s24, 1
      %p99 = por %p97, %p98
      %p101 = scmp.ne.s32.totalorder %s84, %s100
      %p102 = scmp.eq.s32.totalorder %s24, 0
      %p103 = por %p101, %p102
      %s104 = ssub.s32 %s18, %s25
      %p105 = scmp.eq.s32.totalorder %s104, 0
      %s107 = sadd.s32 %s106, 1
      %s108 = scalar_select %p105, %s106, %s107
      %p111 = pneg %p105
      %p112 = scmp.eq.s32.totalorder %s18, 1
      %p113 = por %p111, %p112
      %p114 = scmp.ne.s32.totalorder %s106, %s109
      %p115 = scmp.eq.s32.totalorder %s18, 0
      %p116 = por %p114, %p115
      %p117 = scmp.ne.s32.totalorder %s106, %s109
      %p118 = scmp.eq.s32.totalorder %s23, 1
      %p119 = por %p117, %p118
      %p120 = scmp.ne.s32.totalorder %s109, %s110
      %p121 = scmp.eq.s32.totalorder %s23, 0
      %p122 = por %p120, %p121
      %p123 = scmp.ne.s32.totalorder %s109, %s110
      %p124 = scmp.eq.s32.totalorder %s24, 1
      %p125 = por %p123, %p124
      %p127 = scmp.ne.s32.totalorder %s110, %s126
      %p128 = scmp.eq.s32.totalorder %s24, 0
      %p129 = por %p127, %p128
      %p130 = scmp.le.s32.totalorder 1, %s18
      %p131 = scmp.lt.s32.totalorder %s18, 3
      %p132 = pnand %p130, %p131
      %p133 = pneg %p132
      // Predicated region
      $region9: #{tpu_custom_call.1} parent=5 // pred_check
        _
      $region10: #{tpu_custom_call.1} parent=5 // pred_check_branch
        %135 = sbr.rel (%p132) target = $region12
      $region11: #{tpu_custom_call.1} parent=5 // pred_region
        %s136 = ssub.s32 %s18, 1
      $region12: #{tpu_custom_call.1} parent=5 // pred_fallthru
        _
      %p137 = scmp.lt.s32.totalorder %s18, 2
      // Predicated region
      $region13: #{tpu_custom_call.1} parent=5 // pred_check
        %p138 = pneg %p137
      $region14: #{tpu_custom_call.1} parent=5 // pred_check_branch
        %140 = sbr.rel (%p138) target = $region16
      $region15: #{tpu_custom_call.1} parent=5 // pred_region
        // Predicated region
        $region17: #{tpu_custom_call.1} parent=15 // pred_check
          %p141 = pneg %p38
        $region18: #{tpu_custom_call.1} parent=15 // pred_check_branch
          %143 = sbr.rel (%p141) target = $region20
        $region19: #{tpu_custom_call.1} parent=15 // pred_region
          %s144 = sand.u32 %s28, 1
          %s145 = scalar_lea.sflag [#allocation3], %s144
          %s146 = sand.u32 %s28, 1
          %s147 = smul.addr %s146, 8
          %s148 = scalar_lea.vmem [#allocation2], %s147
          %s150 = ssub.s32 128, 128
          %151 = vsyncadd %s145, %s150
          %s152 = smul.addr %s18, 128
          %s153 = scalar_lea.hbm %s0, %s152
          %s155 = sshll.u32 %s148, 4
          %s156 = int_to_ptr.vmem [resolvable:$true] %s155
          %158 = dma.hbm_to_vmem [thread:$0]  %s153, 128, %s156, %s145
        $region20: #{tpu_custom_call.1} parent=15 // pred_fallthru
          _
        // Predicated region
        $region21: #{tpu_custom_call.1} parent=15 // pred_check
          %p159 = pneg %p64
        $region22: #{tpu_custom_call.1} parent=15 // pred_check_branch
          %161 = sbr.rel (%p159) target = $region24
        $region23: #{tpu_custom_call.1} parent=15 // pred_region
          %s162 = sand.u32 %s18, 1
          %s163 = scalar_lea.sflag [#allocation6], %s162
          %s164 = sand.u32 %s54, 1
          %s165 = smul.addr %s164, 8
          %s166 = scalar_lea.vmem [#allocation5], %s165
          %s168 = ssub.s32 128, 128
          %169 = vsyncadd %s163, %s168
          %s170 = smul.addr %s18, 128
          %s171 = scalar_lea.hbm %s1, %s170
          %s173 = sshll.u32 %s166, 4
          %s174 = int_to_ptr.vmem [resolvable:$true] %s173
          %176 = dma.hbm_to_vmem [thread:$0]  %s171, 128, %s174, %s163
        $region24: #{tpu_custom_call.1} parent=15 // pred_fallthru
          _
        // Predicated region
        $region25: #{tpu_custom_call.1} parent=15 // pred_check
          %p177 = pneg %p90
        $region26: #{tpu_custom_call.1} parent=15 // pred_check_branch
          %179 = sbr.rel (%p177) target = $region28
        $region27: #{tpu_custom_call.1} parent=15 // pred_region
          %s180 = sand.u32 %s18, 1
          %s181 = scalar_lea.sflag [#allocation6], %s180
          %s182 = sand.u32 %s80, 1
          %s183 = smul.addr %s182, 8
          %s184 = scalar_lea.vmem [#allocation7], %s183
          %s186 = ssub.s32 128, 128
          %187 = vsyncadd %s181, %s186
          %s188 = smul.addr %s18, 128
          %s189 = scalar_lea.hbm %s2, %s188
          %s191 = sshll.u32 %s184, 4
          %s192 = int_to_ptr.vmem [resolvable:$true] %s191
          %194 = dma.hbm_to_vmem [thread:$0]  %s189, 128, %s192, %s181
        $region28: #{tpu_custom_call.1} parent=15 // pred_fallthru
          _
      $region16: #{tpu_custom_call.1} parent=5 // pred_fallthru
        _
      %p195 = scmp.le.s32.totalorder 1, %s18
      %p196 = scmp.lt.s32.totalorder %s18, 3
      %p197 = pnand %p195, %p196
      %p198 = pneg %p197
      // Predicated region
      $region29: #{tpu_custom_call.1} parent=5 // pred_check
        _
      $region30: #{tpu_custom_call.1} parent=5 // pred_check_branch
        %200 = sbr.rel (%p197) target = $region32
      $region31: #{tpu_custom_call.1} parent=5 // pred_region
        %s201 = ssub.s32 %s18, 1
        %s202 = sand.u32 %s31, 1
        %s203 = scalar_lea.sflag [#allocation3], %s202
        %s204 = sand.u32 %s31, 1
        %s205 = smul.addr %s204, 8
        %s206 = scalar_lea.vmem [#allocation2], %s205
        // Predicated region
        $region33: #{tpu_custom_call.1} parent=31 // pred_check
          %p207 = pneg %p44
        $region34: #{tpu_custom_call.1} parent=31 // pred_check_branch
          %209 = sbr.rel (%p207) target = $region36
        $region35: #{tpu_custom_call.1} parent=31 // pred_region
          %210 = dma.done %s203, 128
        $region36: #{tpu_custom_call.1} parent=31 // pred_fallthru
          _
        %s211 = sand.u32 %s23, 1
        %s212 = scalar_lea.sflag [#allocation6], %s211
        %s213 = sand.u32 %s57, 1
        %s214 = smul.addr %s213, 8
        %s215 = scalar_lea.vmem [#allocation5], %s214
        // Predicated region
        $region37: #{tpu_custom_call.1} parent=31 // pred_check
          %p216 = pneg %p70
        $region38: #{tpu_custom_call.1} parent=31 // pred_check_branch
          %218 = sbr.rel (%p216) target = $region40
        $region39: #{tpu_custom_call.1} parent=31 // pred_region
          %219 = dma.done %s212, 128
        $region40: #{tpu_custom_call.1} parent=31 // pred_fallthru
          _
        %s220 = sand.u32 %s23, 1
        %s221 = scalar_lea.sflag [#allocation6], %s220
        %s222 = sand.u32 %s83, 1
        %s223 = smul.addr %s222, 8
        %s224 = scalar_lea.vmem [#allocation7], %s223
        // Predicated region
        $region41: #{tpu_custom_call.1} parent=31 // pred_check
          %p225 = pneg %p96
        $region42: #{tpu_custom_call.1} parent=31 // pred_check_branch
          %227 = sbr.rel (%p225) target = $region44
        $region43: #{tpu_custom_call.1} parent=31 // pred_region
          %228 = dma.done %s221, 128
        $region44: #{tpu_custom_call.1} parent=31 // pred_fallthru
          _
        %s229 = sand.u32 %s31, 1
        %s230 = scalar_lea.sflag [#allocation3], %s229
        %s231 = sand.u32 %s31, 1
        %s232 = smul.addr %s231, 8
        %s233 = scalar_lea.vmem [#allocation2], %s232
        %p234 = pneg %p44
        %p235 = pneg %p41
        %s236 = sand.u32 %s23, 1
        %s237 = scalar_lea.sflag [#allocation6], %s236
        %s238 = sand.u32 %s57, 1
        %s239 = smul.addr %s238, 8
        %s240 = scalar_lea.vmem [#allocation5], %s239
        %p241 = pneg %p70
        %p242 = pneg %p67
        %s243 = sand.u32 %s23, 1
        %s244 = scalar_lea.sflag [#allocation6], %s243
        %s245 = sand.u32 %s83, 1
        %s246 = smul.addr %s245, 8
        %s247 = scalar_lea.vmem [#allocation7], %s246
        %p248 = pneg %p96
        %p249 = pneg %p93
        %p250 = pneg %p122
        %p251 = pneg %p119
        %s252 = sand.u32 %s109, 1
        %s253 = scalar_lea.sflag [#allocation4], %s252
        %s254 = sand.u32 %s109, 1
        %s255 = smul.addr %s254, 8
        %s256 = scalar_lea.vmem [#allocation8], %s255
        %v257 = vld [vmem:[%s206] sm:$0xff]
        %v258 = vld [vmem:[%s215] sm:$0xff]
        %v259 = vld [vmem:[%s224] sm:$0xff]
        %v260 = vsub.f32 %v258, %v259
        %v261 = vmul.f32 %v257, %v260
        %262 = vadd.xlane.f32.xlu0 %v261
        %v263 = vpop.xlane.xlu0 %262
        %v264 = vmin.f32 %v263, 0.0
        %v265 = vand.u32 2147483647, %v263
        %v266 = vsub.f32 0.0, %v265
        %v267 = vmul.f32 %v266, 1.442695
        %v268 = vpow.pop %v267
        %v269 = vadd.f32 %v268, 1.0
        %v270 = vlog2.pop %v269
        %v271 = vmul.f32 %v270, 0.6931472
        %v272 = vmul.f32 -0.5, %v268
        %v273 = vadd.f32 %v272, 1.0
        %v274 = vmul.f32 %v273, %v268
        %v275 = vand.u32 2147483647, %v268
        %vm276 = vcmp.lt.f32.partialorder %v275, 0.0004427343
        %v277 = vsel %vm276, %v274, %v271
        %v278 = vsub.f32 %v264, %v277
        %s279 = smul.u32 %s23, 8
        %v280 = vlaneseq
        %v281 = vshrl.u32 %v280, 7
        %v282 = vstv %s279
        %v283 = vadd.s32 %v282, %v281
        %vm284 = vcmp.lt.s32.totalorder %v283, 8
        %v285 = vsel %vm284, %v278, 0.0
        %vm286 = vcmask 7168
        %v287 = vsel %vm286, %v285, 0.0
        %288 = vadd.xlane.f32.xlu0 %v287
        %v289 = vpop.xlane.xlu0 %288
        %v290 = vrot.slane %v289, 4
        %v291 = vadd.f32 %v289, %v290
        %v292 = vrot.slane %v291, 2
        %v293 = vadd.f32 %v291, %v292
        %v294 = vrot.slane %v293, 1
        %v295 = vadd.f32 %v293, %v294
        %s296 = vtos %v295
        %s297 = ssub.f32 0.0, %s296
        %v298 = vstv %s297
        %299 = vst [vmem:[%s256] sm:$0xff] %v298
        %s300 = sand.u32 %s109, 1
        %s301 = scalar_lea.sflag [#allocation4], %s300
        %s302 = sand.u32 %s109, 1
        %s303 = smul.addr %s302, 8
        %s304 = scalar_lea.vmem [#allocation8], %s303
        // Predicated region
        $region45: #{tpu_custom_call.1} parent=31 // pred_check
          %p305 = pneg %p119
        $region46: #{tpu_custom_call.1} parent=31 // pred_check_branch
          %307 = sbr.rel (%p305) target = $region48
        $region47: #{tpu_custom_call.1} parent=31 // pred_region
          %s309 = ssub.s32 128, 128
          %310 = vsyncadd %s301, %s309
          %s311 = smul.addr %s23, 128
          %s312 = scalar_lea.hbm %s3, %s311
          %s314 = sshll.u32 %s304, 4
          %s315 = int_to_ptr.vmem [resolvable:$true] %s314
          %317 = dma.vmem_to_hbm [thread:$0]  %s315, 128, %s312, %s301
        $region48: #{tpu_custom_call.1} parent=31 // pred_fallthru
          _
      $region32: #{tpu_custom_call.1} parent=5 // pred_fallthru
        _
      %p318 = scmp.le.s32.totalorder 2, %s18
      // Predicated region
      $region49: #{tpu_custom_call.1} parent=5 // pred_check
        %p319 = pneg %p318
      $region50: #{tpu_custom_call.1} parent=5 // pred_check_branch
        %321 = sbr.rel (%p319) target = $region52
      $region51: #{tpu_custom_call.1} parent=5 // pred_region
        %s322 = ssub.s32 %s18, 2
        // Predicated region
        $region53: #{tpu_custom_call.1} parent=51 // pred_check
          %p323 = pneg %p125
        $region54: #{tpu_custom_call.1} parent=51 // pred_check_branch
          %325 = sbr.rel (%p323) target = $region56
        $region55: #{tpu_custom_call.1} parent=51 // pred_region
          %s326 = sand.u32 %s110, 1
          %s327 = scalar_lea.sflag [#allocation4], %s326
          %s328 = sand.u32 %s110, 1
          %s329 = smul.addr %s328, 8
          %s330 = scalar_lea.vmem [#allocation8], %s329
          %331 = dma.done %s327, 128
        $region56: #{tpu_custom_call.1} parent=51 // pred_fallthru
          _
      $region52: #{tpu_custom_call.1} parent=5 // pred_fallthru
        _
    $region6: #{tpu_custom_call.1} parent=1 // loop_footer
      %s22 = sadd.s32 1, %s18
    $region7: #{tpu_custom_call.1} parent=1 // loop_footer_branch
      %17 = sbr.rel target = $region3
    $region8: #{tpu_custom_call.1} parent=1 // loop_exit
      _
    %332 = vsyncpa [#allocation3], 1
    %s333 = scalar_lea.sflag [#allocation3], 1
    %334 = vsyncpa %s333, 1
    %335 = vsyncpa [#allocation6], 1
    %s336 = scalar_lea.sflag [#allocation6], 1
    %337 = vsyncpa %s336, 1
    %338 = vsyncpa [#allocation4], 1
    %s339 = scalar_lea.sflag [#allocation4], 1
    %340 = vsyncpa %s339, 1

</llo_original>
